<compile_context>
chip_gen: v5e
topology: v5e:2x2
jax: 0.10.0
libtpu: 0.0.40
codegen_flags: <defaults>
</compile_context>

<pallas_src>
import jax
import jax.numpy as jnp
from jax.experimental import pallas as pl
from jax.experimental.pallas import tpu as pltpu


def _round_up(v, m):
    return ((v + m - 1) // m) * m


def _gate_kernel(g_ref, x_ref, wg_ref, wx_ref, b_ref, wp_ref, bp_ref, out_ref):
    x = x_ref[...]                                          # (TM, F_lp), input dtype

    # Fused projection: relu(BN(Wg g) + BN(Wx x)) with BN folded into W/b.
    # Two bf16 MXU dots with f32 accumulation (no wrapper-side concat needed).
    h = jnp.dot(g_ref[...], wg_ref[...], preferred_element_type=jnp.float32)
    h = h + jnp.dot(x.astype(wx_ref.dtype), wx_ref[...],
                    preferred_element_type=jnp.float32)
    h = jnp.maximum(h + b_ref[...], 0.0)                    # (TM, F_lp) f32

    # psi = sigmoid(BN(Linear_{F_l -> 1}(h))) -- N = 1, so VPU mul + lane reduce
    # (XLU) + EUP sigmoid instead of a wasteful 1-column MXU matmul.
    p = jnp.sum(h * wp_ref[...], axis=-1, keepdims=True) + bp_ref[...]  # (TM, 1)
    psi = jax.nn.sigmoid(p)                                 # numerically stable

    out_ref[...] = (x.astype(jnp.float32) * psi).astype(out_ref.dtype)


def frequency_attention_gate(g, x, params, *, tm=None, mxu_dtype=jnp.bfloat16):
    """Pallas wrapper. g:(B,F_g), x:(B,F_l) -> (B,F_l). `params` are BN-folded."""
    B, F_l = x.shape
    F_g = g.shape[1]
    F_lp = _round_up(F_l, 128)        # lane-dense output width
    pad = F_lp - F_l

    # NOTE: in real usage the weight padding / bf16 cast should be hoisted out of
    # the step function (it is static per checkpoint).
    wg = params["wg"].astype(mxu_dtype)        # (F_g, F_l)
    wx = params["wx"].astype(mxu_dtype)        # (F_l, F_l)
    b = params["b"]                            # (1, F_l)   f32
    wp = params["wp_row"]                      # (1, F_l)   f32
    bp = params["bp"]                          # (1, 1)     f32
    if pad:
        wg = jnp.pad(wg, ((0, 0), (0, pad)))
        wx = jnp.pad(wx, ((0, pad), (0, pad)))
        b = jnp.pad(b, ((0, 0), (0, pad)))
        wp = jnp.pad(wp, ((0, 0), (0, pad)))
        x_p = jnp.pad(x, ((0, 0), (0, pad)))
    else:
        x_p = x
    g_in = g.astype(mxu_dtype)   # MXU-only operand; x is cast in-kernel (one DMA)

    # Generation-aware VMEM budget / tile cap (v5e/v6e: 128 MiB, v7x: 64 MiB).
    try:
        vmem_cap = int(pltpu.get_tpu_info().vmem_capacity_bytes)
    except Exception:
        vmem_cap = 64 * 1024 * 1024
    if vmem_cap >= 96 * 1024 * 1024:
        tm_cap, vmem_limit = 1024, 96 * 1024 * 1024
    else:
        tm_cap, vmem_limit = 512, 48 * 1024 * 1024

    if tm is None:
        if B <= 8:
            tm = B                              # single full-extent tile
        else:
            # >= 2 grid steps so the "parallel" axis can shard across v7x's 2 TCs.
            tm = min(tm_cap, max(8, _round_up(pl.cdiv(B, 2), 8)))
    grid = (pl.cdiv(B, tm),)

    cost = pl.CostEstimate(
        flops=int(2 * B * (F_g + F_lp) * F_lp + 4 * B * F_lp),
        transcendentals=int(B),
        bytes_accessed=int(
            g_in.size * g_in.dtype.itemsize
            + x_p.size * x_p.dtype.itemsize
            + B * F_lp * x.dtype.itemsize
            + wg.size * wg.dtype.itemsize
            + wx.size * wx.dtype.itemsize
            + (b.size + wp.size + bp.size) * 4
        ),
    )

    out_shape = jax.ShapeDtypeStruct((B, F_lp), x.dtype)

    def _call(single_buffer_resident):
        def _res(shape):
            # Grid-invariant operands: single-buffer (double-buffering them is
            # pure VMEM waste since the index_map is constant).
            if single_buffer_resident:
                return pl.BlockSpec(shape, lambda i: (0, 0),
                                    pipeline_mode=pl.Buffered(1))
            return pl.BlockSpec(shape, lambda i: (0, 0))

        return pl.pallas_call(
            _gate_kernel,
            out_shape=out_shape,
            grid_spec=pltpu.PrefetchScalarGridSpec(
                num_scalar_prefetch=0,
                grid=grid,
                in_specs=[
                    pl.BlockSpec((tm, F_g), lambda i: (i, 0)),   # g  (bf16), streamed
                    pl.BlockSpec((tm, F_lp), lambda i: (i, 0)),  # x, streamed once
                    _res((F_g, F_lp)),                           # Wg' (bf16), resident
                    _res((F_lp, F_lp)),                          # Wx' (bf16), resident
                    _res((1, F_lp)),                             # fused bias (f32)
                    _res((1, F_lp)),                             # psi weight row (f32)
                    _res((1, 1)),                                # psi bias (f32)
                ],
                out_specs=pl.BlockSpec((tm, F_lp), lambda i: (i, 0)),
            ),
            compiler_params=pltpu.CompilerParams(
                dimension_semantics=("parallel",),   # megacore-shard batch tiles (v7x)
                vmem_limit_bytes=vmem_limit,
            ),
            cost_estimate=cost,
        )(g_in, x_p, wg, wx, b, wp, bp)

    try:
        out_p = _call(True)
    except Exception:
        # Fallback if this JAX build rejects single-buffering (Buffered(1)).
        out_p = _call(False)

    return out_p[:, :F_l] if pad else out_p


def _bn_affine(gamma, beta, mean, var, eps=1e-5):
    """Fold eval-mode BatchNorm1d into per-feature (scale, shift)."""
    scale = gamma / jnp.sqrt(var + eps)
    shift = beta - mean * scale
    return scale, shift


def make_params(key, F_g, F_l):
    """Build raw (PyTorch-style) params and the BN-folded kernel params."""
    ks = jax.random.split(key, 12)
    # Linear weights in PyTorch layout (out, in).
    wg = jax.random.normal(ks[0], (F_l, F_g), jnp.float32) * 0.1
    bg = jax.random.normal(ks[1], (F_l,), jnp.float32) * 0.1
    wx = jax.random.normal(ks[2], (F_l, F_l), jnp.float32) * 0.1
    bx = jax.random.normal(ks[3], (F_l,), jnp.float32) * 0.1
    wp = jax.random.normal(ks[4], (1, F_l), jnp.float32) * 0.1
    bp = jax.random.normal(ks[5], (1,), jnp.float32) * 0.1
    # Synthetic BatchNorm1d params / running stats (deterministic).
    g_gam = 1.0 + 0.1 * jax.random.normal(ks[6], (F_l,), jnp.float32)
    g_bet = 0.1 * jax.random.normal(ks[7], (F_l,), jnp.float32)
    g_mu = 0.1 * jax.random.normal(ks[8], (F_l,), jnp.float32)
    g_var = jax.random.uniform(ks[9], (F_l,), jnp.float32, 0.5, 1.5)
    x_gam = 1.0 + 0.1 * jax.random.normal(ks[10], (F_l,), jnp.float32)
    x_bet = 0.1 * jax.random.normal(ks[11], (F_l,), jnp.float32)
    x_mu = jnp.zeros((F_l,), jnp.float32)
    x_var = jnp.ones((F_l,), jnp.float32)
    p_gam = jnp.ones((1,), jnp.float32)
    p_bet = jnp.zeros((1,), jnp.float32)
    p_mu = jnp.zeros((1,), jnp.float32)
    p_var = jnp.ones((1,), jnp.float32)

    sg, tg = _bn_affine(g_gam, g_bet, g_mu, g_var)
    sx, tx = _bn_affine(x_gam, x_bet, x_mu, x_var)
    sp, tp = _bn_affine(p_gam, p_bet, p_mu, p_var)

    # Fold BN into the linear layers (column scale on W^T, affine on bias).
    wg_f = wg.T * sg[None, :]                 # (F_g, F_l)
    bg_f = bg * sg + tg                       # (F_l,)
    wx_f = wx.T * sx[None, :]                 # (F_l, F_l)
    bx_f = bx * sx + tx                       # (F_l,)
    wp_f = (wp * sp[:, None]).reshape(1, F_l)  # (1, F_l)
    bp_f = (bp * sp + tp).reshape(1, 1)        # (1, 1)

    fused = dict(wg=wg_f, wx=wx_f, b=(bg_f + bx_f).reshape(1, F_l),
                 wp_row=wp_f, bp=bp_f)
    raw = dict(wg=wg, bg=bg, wx=wx, bx=bx, wp=wp, bp=bp,
               sg=sg, tg=tg, sx=sx, tx=tx, sp=sp, tp=tp)
    return fused, raw


def _reference(g, x, p):
    """Pure-JAX f32 reference using the ORIGINAL (unfolded) params, eval-mode BN."""
    g1 = (g @ p["wg"].T + p["bg"]) * p["sg"] + p["tg"]
    x1 = (x @ p["wx"].T + p["bx"]) * p["sx"] + p["tx"]
    h = jnp.maximum(g1 + x1, 0.0)
    psi = jax.nn.sigmoid((h @ p["wp"].T + p["bp"]) * p["sp"] + p["tp"])
    return x * psi


if __name__ == "__main__":
    B, F_g, F_l = 8, 32, 16
    key = jax.random.PRNGKey(0)
    kg, kx, kp = jax.random.split(key, 3)
    g = jax.random.normal(kg, (B, F_g), jnp.float32)
    x = jax.random.normal(kx, (B, F_l), jnp.float32)
    fused_params, raw_params = make_params(kp, F_g, F_l)

    out = frequency_attention_gate(g, x, fused_params)
    out = jax.block_until_ready(out)

    ref = _reference(g, x, raw_params)
    assert out.shape == (B, F_l)
    err = float(jnp.max(jnp.abs(out - ref)))
    # bf16 MXU operands in the kernel -> relaxed tolerance vs. the full-f32 reference.
    assert jnp.allclose(out, ref, atol=3e-2, rtol=3e-2), err
    print("KERNEL_OK")
</pallas_src>

<mosaic_0001>
module attributes {stable_mosaic.version = 11 : i64} {
  func.func @_gate_kernel(%arg0: i32, %arg1: memref<8x32xbf16, #tpu.memory_space<vmem>>, %arg2: memref<8x128xf32, #tpu.memory_space<vmem>>, %arg3: memref<32x128xbf16, #tpu.memory_space<vmem>>, %arg4: memref<128x128xbf16, #tpu.memory_space<vmem>>, %arg5: memref<1x128xf32, #tpu.memory_space<vmem>>, %arg6: memref<1x128xf32, #tpu.memory_space<vmem>>, %arg7: memref<1x1xf32, #tpu.memory_space<vmem>>, %arg8: memref<8x128xf32, #tpu.memory_space<vmem>>) attributes {dimension_semantics = [#tpu.dimension_semantics<parallel>], iteration_bounds = array<i64: 1>, scalar_prefetch = 0 : i64, scratch_operands = 0 : i64, tpu.core_type = #tpu.core_type<tc>, window_params = [{transform_indices = @transform_0, window_bounds = array<i64: 8, 32>}, {transform_indices = @transform_1, window_bounds = array<i64: 8, 128>}, {pipeline_mode = #tpu.pipeline_mode<synchronous>, transform_indices = @transform_2, window_bounds = array<i64: 32, 128>}, {pipeline_mode = #tpu.pipeline_mode<synchronous>, transform_indices = @transform_3, window_bounds = array<i64: 128, 128>}, {pipeline_mode = #tpu.pipeline_mode<synchronous>, transform_indices = @transform_4, window_bounds = array<i64: 1, 128>}, {pipeline_mode = #tpu.pipeline_mode<synchronous>, transform_indices = @transform_5, window_bounds = array<i64: 1, 128>}, {pipeline_mode = #tpu.pipeline_mode<synchronous>, transform_indices = @transform_6, window_bounds = array<i64: 1, 1>}, {transform_indices = @transform_7, window_bounds = array<i64: 8, 128>}]} {
    %c0 = arith.constant 0 : index
    %c0_0 = arith.constant 0 : index
    %0 = vector.load %arg2[%c0, %c0_0] : memref<8x128xf32, #tpu.memory_space<vmem>>, vector<8x128xf32>
    %c0_1 = arith.constant 0 : index
    %c0_2 = arith.constant 0 : index
    %1 = vector.load %arg1[%c0_1, %c0_2] : memref<8x32xbf16, #tpu.memory_space<vmem>>, vector<8x32xbf16>
    %c0_3 = arith.constant 0 : index
    %c0_4 = arith.constant 0 : index
    %2 = vector.load %arg3[%c0_3, %c0_4] : memref<32x128xbf16, #tpu.memory_space<vmem>>, vector<32x128xbf16>
    %cst = arith.constant dense<0.000000e+00> : vector<8x128xf32>
    %3 = tpu.matmul %1, %2, %cst {dimension_numbers = #tpu.dot_dimension_numbers<[1], [0], [0], [1], [0, 0, 1, 1], [], []>} : vector<8x32xbf16>, vector<32x128xbf16>, vector<8x128xf32> -> vector<8x128xf32>
    %4 = arith.truncf %0 : vector<8x128xf32> to vector<8x128xbf16>
    %c0_5 = arith.constant 0 : index
    %c0_6 = arith.constant 0 : index
    %5 = vector.load %arg4[%c0_5, %c0_6] : memref<128x128xbf16, #tpu.memory_space<vmem>>, vector<128x128xbf16>
    %cst_7 = arith.constant dense<0.000000e+00> : vector<8x128xf32>
    %6 = tpu.matmul %4, %5, %cst_7 {dimension_numbers = #tpu.dot_dimension_numbers<[1], [0], [0], [1], [0, 0, 1, 1], [], []>} : vector<8x128xbf16>, vector<128x128xbf16>, vector<8x128xf32> -> vector<8x128xf32>
    %7 = arith.addf %3, %6 : vector<8x128xf32>
    %c0_8 = arith.constant 0 : index
    %c0_9 = arith.constant 0 : index
    %8 = vector.load %arg5[%c0_8, %c0_9] : memref<1x128xf32, #tpu.memory_space<vmem>>, vector<1x128xf32>
    %9 = vector.broadcast %8 : vector<1x128xf32> to vector<8x128xf32>
    %10 = arith.addf %7, %9 : vector<8x128xf32>
    %cst_10 = arith.constant 0.000000e+00 : f32
    %11 = vector.broadcast %cst_10 : f32 to vector<8x128xf32>
    %12 = arith.maximumf %10, %11 : vector<8x128xf32>
    %c0_11 = arith.constant 0 : index
    %c0_12 = arith.constant 0 : index
    %13 = vector.load %arg6[%c0_11, %c0_12] : memref<1x128xf32, #tpu.memory_space<vmem>>, vector<1x128xf32>
    %14 = vector.broadcast %13 : vector<1x128xf32> to vector<8x128xf32>
    %15 = arith.mulf %12, %14 : vector<8x128xf32>
    %cst_13 = arith.constant dense<0.000000e+00> : vector<8xf32>
    %16 = vector.multi_reduction <add>, %15, %cst_13 [1] : vector<8x128xf32> to vector<8xf32>
    %17 = vector.shape_cast %16 : vector<8xf32> to vector<8x1xf32>
    %c0_14 = arith.constant 0 : index
    %c0_15 = arith.constant 0 : index
    %18 = vector.load %arg7[%c0_14, %c0_15] : memref<1x1xf32, #tpu.memory_space<vmem>>, vector<1x1xf32>
    %19 = vector.broadcast %18 : vector<1x1xf32> to vector<8x1xf32>
    %20 = arith.addf %17, %19 : vector<8x1xf32>
    %21 = arith.negf %20 : vector<8x1xf32>
    %22 = math.exp %21 : vector<8x1xf32>
    %cst_16 = arith.constant 1.000000e+00 : f32
    %23 = vector.broadcast %cst_16 : f32 to vector<8x1xf32>
    %24 = arith.addf %23, %22 : vector<8x1xf32>
    %25 = arith.divf %23, %24 : vector<8x1xf32>
    %26 = vector.broadcast %25 : vector<8x1xf32> to vector<8x128xf32>
    %27 = arith.mulf %0, %26 : vector<8x128xf32>
    %c0_17 = arith.constant 0 : index
    %c0_18 = arith.constant 0 : index
    %28 = vector.load %arg8[%c0_17, %c0_18] : memref<8x128xf32, #tpu.memory_space<vmem>>, vector<8x128xf32>
    tpu.vector_store %arg8[%c0_17, %c0_18], %27 {strides = array<i32>} : memref<8x128xf32, #tpu.memory_space<vmem>>, vector<8x128xf32>,
    return
  }
  func.func @transform_0(%arg0: i32) -> (i32, i32) {
    %c0_i32 = arith.constant 0 : i32
    %c0_i32_0 = arith.constant 0 : i32
    return %arg0, %c0_i32 : i32, i32
  }
  func.func @transform_1(%arg0: i32) -> (i32, i32) {
    %c0_i32 = arith.constant 0 : i32
    %c0_i32_0 = arith.constant 0 : i32
    return %arg0, %c0_i32 : i32, i32
  }
  func.func @transform_2(%arg0: i32) -> (i32, i32) {
    %c0_i32 = arith.constant 0 : i32
    %c0_i32_0 = arith.constant 0 : i32
    %c0_i32_1 = arith.constant 0 : i32
    return %c0_i32, %c0_i32_0 : i32, i32
  }
  func.func @transform_3(%arg0: i32) -> (i32, i32) {
    %c0_i32 = arith.constant 0 : i32
    %c0_i32_0 = arith.constant 0 : i32
    %c0_i32_1 = arith.constant 0 : i32
    return %c0_i32, %c0_i32_0 : i32, i32
  }
  func.func @transform_4(%arg0: i32) -> (i32, i32) {
    %c0_i32 = arith.constant 0 : i32
    %c0_i32_0 = arith.constant 0 : i32
    %c0_i32_1 = arith.constant 0 : i32
    return %c0_i32, %c0_i32_0 : i32, i32
  }
  func.func @transform_5(%arg0: i32) -> (i32, i32) {
    %c0_i32 = arith.constant 0 : i32
    %c0_i32_0 = arith.constant 0 : i32
    %c0_i32_1 = arith.constant 0 : i32
    return %c0_i32, %c0_i32_0 : i32, i32
  }
  func.func @transform_6(%arg0: i32) -> (i32, i32) {
    %c0_i32 = arith.constant 0 : i32
    %c0_i32_0 = arith.constant 0 : i32
    %c0_i32_1 = arith.constant 0 : i32
    return %c0_i32, %c0_i32_0 : i32, i32
  }
  func.func @transform_7(%arg0: i32) -> (i32, i32) {
    %c0_i32 = arith.constant 0 : i32
    %c0_i32_0 = arith.constant 0 : i32
    return %arg0, %c0_i32 : i32, i32
  }
}

module attributes {stable_mosaic.version = 11 : i64} {
  func.func @_gate_kernel(%arg0: i32, %arg1: memref<8x32xbf16, #tpu.memory_space<vmem>>, %arg2: memref<8x128xf32, #tpu.memory_space<vmem>>, %arg3: memref<32x128xbf16, #tpu.memory_space<vmem>>, %arg4: memref<128x128xbf16, #tpu.memory_space<vmem>>, %arg5: memref<1x128xf32, #tpu.memory_space<vmem>>, %arg6: memref<1x128xf32, #tpu.memory_space<vmem>>, %arg7: memref<1x1xf32, #tpu.memory_space<vmem>>, %arg8: memref<8x128xf32, #tpu.memory_space<vmem>>) attributes {dimension_semantics = [#tpu.dimension_semantics<parallel>], iteration_bounds = array<i64: 1>, scalar_prefetch = 0 : i64, scratch_operands = 0 : i64, tpu.core_type = #tpu.core_type<tc>, window_params = [{transform_indices = @transform_0, window_bounds = array<i64: 8, 32>}, {transform_indices = @transform_1, window_bounds = array<i64: 8, 128>}, {pipeline_mode = #tpu.pipeline_mode<synchronous>, transform_indices = @transform_2, window_bounds = array<i64: 32, 128>}, {pipeline_mode = #tpu.pipeline_mode<synchronous>, transform_indices = @transform_3, window_bounds = array<i64: 128, 128>}, {pipeline_mode = #tpu.pipeline_mode<synchronous>, transform_indices = @transform_4, window_bounds = array<i64: 1, 128>}, {pipeline_mode = #tpu.pipeline_mode<synchronous>, transform_indices = @transform_5, window_bounds = array<i64: 1, 128>}, {pipeline_mode = #tpu.pipeline_mode<synchronous>, transform_indices = @transform_6, window_bounds = array<i64: 1, 1>}, {transform_indices = @transform_7, window_bounds = array<i64: 8, 128>}]} {
    %c0 = arith.constant 0 : index
    %c0_0 = arith.constant 0 : index
    %0 = vector.load %arg2[%c0, %c0_0] : memref<8x128xf32, #tpu.memory_space<vmem>>, vector<8x128xf32>
    %c0_1 = arith.constant 0 : index
    %c0_2 = arith.constant 0 : index
    %1 = vector.load %arg1[%c0_1, %c0_2] : memref<8x32xbf16, #tpu.memory_space<vmem>>, vector<8x32xbf16>
    %c0_3 = arith.constant 0 : index
    %c0_4 = arith.constant 0 : index
    %2 = vector.load %arg3[%c0_3, %c0_4] : memref<32x128xbf16, #tpu.memory_space<vmem>>, vector<32x128xbf16>
    %cst = arith.constant dense<0.000000e+00> : vector<8x128xf32>
    %3 = tpu.matmul %1, %2, %cst {dimension_numbers = #tpu.dot_dimension_numbers<[1], [0], [0], [1], [0, 0, 1, 1], [], []>} : vector<8x32xbf16>, vector<32x128xbf16>, vector<8x128xf32> -> vector<8x128xf32>
    %4 = arith.truncf %0 : vector<8x128xf32> to vector<8x128xbf16>
    %c0_5 = arith.constant 0 : index
    %c0_6 = arith.constant 0 : index
    %5 = vector.load %arg4[%c0_5, %c0_6] : memref<128x128xbf16, #tpu.memory_space<vmem>>, vector<128x128xbf16>
    %cst_7 = arith.constant dense<0.000000e+00> : vector<8x128xf32>
    %6 = tpu.matmul %4, %5, %cst_7 {dimension_numbers = #tpu.dot_dimension_numbers<[1], [0], [0], [1], [0, 0, 1, 1], [], []>} : vector<8x128xbf16>, vector<128x128xbf16>, vector<8x128xf32> -> vector<8x128xf32>
    %7 = arith.addf %3, %6 : vector<8x128xf32>
    %c0_8 = arith.constant 0 : index
    %c0_9 = arith.constant 0 : index
    %8 = vector.load %arg5[%c0_8, %c0_9] : memref<1x128xf32, #tpu.memory_space<vmem>>, vector<1x128xf32>
    %9 = vector.broadcast %8 : vector<1x128xf32> to vector<8x128xf32>
    %10 = arith.addf %7, %9 : vector<8x128xf32>
    %cst_10 = arith.constant 0.000000e+00 : f32
    %11 = vector.broadcast %cst_10 : f32 to vector<8x128xf32>
    %12 = arith.maximumf %10, %11 : vector<8x128xf32>
    %c0_11 = arith.constant 0 : index
    %c0_12 = arith.constant 0 : index
    %13 = vector.load %arg6[%c0_11, %c0_12] : memref<1x128xf32, #tpu.memory_space<vmem>>, vector<1x128xf32>
    %14 = vector.broadcast %13 : vector<1x128xf32> to vector<8x128xf32>
    %15 = arith.mulf %12, %14 : vector<8x128xf32>
    %cst_13 = arith.constant dense<0.000000e+00> : vector<8xf32>
    %16 = vector.multi_reduction <add>, %15, %cst_13 [1] : vector<8x128xf32> to vector<8xf32>
    %17 = vector.shape_cast %16 : vector<8xf32> to vector<8x1xf32>
    %c0_14 = arith.constant 0 : index
    %c0_15 = arith.constant 0 : index
    %18 = vector.load %arg7[%c0_14, %c0_15] : memref<1x1xf32, #tpu.memory_space<vmem>>, vector<1x1xf32>
    %19 = vector.broadcast %18 : vector<1x1xf32> to vector<8x1xf32>
    %20 = arith.addf %17, %19 : vector<8x1xf32>
    %21 = arith.negf %20 : vector<8x1xf32>
    %22 = math.exp %21 : vector<8x1xf32>
    %cst_16 = arith.constant 1.000000e+00 : f32
    %23 = vector.broadcast %cst_16 : f32 to vector<8x1xf32>
    %24 = arith.addf %23, %22 : vector<8x1xf32>
    %25 = arith.divf %23, %24 : vector<8x1xf32>
    %26 = vector.broadcast %25 : vector<8x1xf32> to vector<8x128xf32>
    %27 = arith.mulf %0, %26 : vector<8x128xf32>
    %c0_17 = arith.constant 0 : index
    %c0_18 = arith.constant 0 : index
    %28 = vector.load %arg8[%c0_17, %c0_18] : memref<8x128xf32, #tpu.memory_space<vmem>>, vector<8x128xf32>
    tpu.vector_store %arg8[%c0_17, %c0_18], %27 {strides = array<i32>} : memref<8x128xf32, #tpu.memory_space<vmem>>, vector<8x128xf32>,
    return
  }
  func.func @transform_0(%arg0: i32) -> (i32, i32) {
    %c0_i32 = arith.constant 0 : i32
    %c0_i32_0 = arith.constant 0 : i32
    return %arg0, %c0_i32 : i32, i32
  }
  func.func @transform_1(%arg0: i32) -> (i32, i32) {
    %c0_i32 = arith.constant 0 : i32
    %c0_i32_0 = arith.constant 0 : i32
    return %arg0, %c0_i32 : i32, i32
  }
  func.func @transform_2(%arg0: i32) -> (i32, i32) {
    %c0_i32 = arith.constant 0 : i32
    %c0_i32_0 = arith.constant 0 : i32
    %c0_i32_1 = arith.constant 0 : i32
    return %c0_i32, %c0_i32_0 : i32, i32
  }
  func.func @transform_3(%arg0: i32) -> (i32, i32) {
    %c0_i32 = arith.constant 0 : i32
    %c0_i32_0 = arith.constant 0 : i32
    %c0_i32_1 = arith.constant 0 : i32
    return %c0_i32, %c0_i32_0 : i32, i32
  }
  func.func @transform_4(%arg0: i32) -> (i32, i32) {
    %c0_i32 = arith.constant 0 : i32
    %c0_i32_0 = arith.constant 0 : i32
    %c0_i32_1 = arith.constant 0 : i32
    return %c0_i32, %c0_i32_0 : i32, i32
  }
  func.func @transform_5(%arg0: i32) -> (i32, i32) {
    %c0_i32 = arith.constant 0 : i32
    %c0_i32_0 = arith.constant 0 : i32
    %c0_i32_1 = arith.constant 0 : i32
    return %c0_i32, %c0_i32_0 : i32, i32
  }
  func.func @transform_6(%arg0: i32) -> (i32, i32) {
    %c0_i32 = arith.constant 0 : i32
    %c0_i32_0 = arith.constant 0 : i32
    %c0_i32_1 = arith.constant 0 : i32
    return %c0_i32, %c0_i32_0 : i32, i32
  }
  func.func @transform_7(%arg0: i32) -> (i32, i32) {
    %c0_i32 = arith.constant 0 : i32
    %c0_i32_0 = arith.constant 0 : i32
    return %arg0, %c0_i32 : i32, i32
  }
}

</mosaic_0001>

<llo_original>
// kernel: tpu_custom_call.1
$region0: #{tpu_custom_call.1}
  #allocation0 [shape = 'u32[]', space=smem, size = 0x4, offset = 0x4, fixed_abs, tag = 'smem constant byte address 0x4 - core index']
  #allocation1 [shape = 'u32[72,128]{1,0:T(1,128)}', space=vmem, size = 0x9000, scoped, tag = 'internal scratch']
  #allocation2 [shape = 'f32[1,1]{1,0:T(1,128)S(1)}', space=vmem, size = 0x200, scoped, tag = 'scoped memory for tpu_custom_call.1']
  %s0 = inlined_call_operand.hbm [shape: bf16[8,32], index: 0, kind: input, shape index: {}]
  %s1 = inlined_call_operand.hbm [shape: f32[8,128], index: 1, kind: input, shape index: {}]
  %s2 = inlined_call_operand.hbm [shape: bf16[32,128], index: 2, kind: input, shape index: {}]
  %s3 = inlined_call_operand.hbm [shape: bf16[128,128], index: 3, kind: input, shape index: {}]
  %s4 = inlined_call_operand.vmem [shape: f32[1,128], index: 4, kind: input, shape index: {}]
  %s5 = inlined_call_operand.vmem [shape: f32[1,128], index: 5, kind: input, shape index: {}]
  %s6 = inlined_call_operand.<no memory space> [shape: f32[1,1], index: 6, kind: input, shape index: {}]
  %s7 = inlined_call_operand.hbm [shape: f32[8,128], index: 7, kind: output, shape index: {}]
  %s8 = sld [smem:[#allocation0]]
  $region54: #{tpu_custom_call.1} parent=0
    _
  %s10 = ssub.s32 1, %s8
  %s11 = scalar_select 0, %s10, %s8
  %v12 = vstv %s6
  %13 = vst [vmem:[#allocation2] sm:$0x1] %v12
  $region1: #{tpu_custom_call.1} parent=0
    #allocation3 [shape = 'u8[2048]{0}', space=vmem, size = 0x800, scoped, tag = 'input window, operand 0, single buffered']
    #allocation4 [shape = 's32[1]{0}', space=sflag, size = 0x4, scoped, tag = 'scoped memory for tpu_custom_call.1']
    #allocation5 [shape = 's32[1]{0}', space=sflag, size = 0x4, scoped, tag = 'scoped memory for tpu_custom_call.1']
    #allocation6 [shape = 'u8[4096]{0}', space=vmem, size = 0x1000, scoped, tag = 'input window, operand 1, single buffered']
    #allocation7 [shape = 's32[1]{0}', space=sflag, size = 0x4, scoped, tag = 'scoped memory for tpu_custom_call.1']
    #allocation8 [shape = 'u8[8192]{0}', space=vmem, size = 0x2000, scoped, tag = 'input window, operand 2, single buffered']
    #allocation9 [shape = 'u8[32768]{0}', space=vmem, size = 0x8000, scoped, tag = 'input window, operand 3, single buffered']
    #allocation10 [shape = 's32[1]{0}', space=sflag, size = 0x4, scoped, tag = 'scoped memory for tpu_custom_call.1']
    #allocation11 [shape = 'u8[4096]{0}', space=vmem, size = 0x1000, scoped, tag = 'output window, operand 0, single buffered']
    %14 = vsyncpa [#allocation4], 0
    %15 = vsyncpa [#allocation7], 0
    %16 = vsyncpa [#allocation10], 0
    %17 = vsyncpa [#allocation5], 0
    // Predicated region
    $region2: #{tpu_custom_call.1} parent=1 // pred_check
      _
    $region3: #{tpu_custom_call.1} parent=1 // pred_check_branch
      %19 = sbr.rel (0) target = $region5
    $region4: #{tpu_custom_call.1} parent=1 // pred_region
      %21 = vsyncadd [#allocation4], 0
      %s23 = sshll.u32 %s0, 4
      %s24 = int_to_ptr.hbm [resolvable:$true] %s23
      %s25 = sshll.u32 [#allocation3], 4
      %s26 = int_to_ptr.vmem [resolvable:$true] %s25
      %28 = dma.hbm_to_vmem [thread:$0]  %s24, 64, %s26, [#allocation4]
    $region5: #{tpu_custom_call.1} parent=1 // pred_fallthru
      _
    // Predicated region
    $region6: #{tpu_custom_call.1} parent=1 // pred_check
      _
    $region7: #{tpu_custom_call.1} parent=1 // pred_check_branch
      %30 = sbr.rel (0) target = $region9
    $region8: #{tpu_custom_call.1} parent=1 // pred_region
      %32 = vsyncadd [#allocation7], 0
      %s34 = sshll.u32 %s1, 4
      %s35 = int_to_ptr.hbm [resolvable:$true] %s34
      %s36 = sshll.u32 [#allocation6], 4
      %s37 = int_to_ptr.vmem [resolvable:$true] %s36
      %39 = dma.hbm_to_vmem [thread:$0]  %s35, 128, %s37, [#allocation7]
    $region9: #{tpu_custom_call.1} parent=1 // pred_fallthru
      _
    // Predicated region
    $region10: #{tpu_custom_call.1} parent=1 // pred_check
      _
    $region11: #{tpu_custom_call.1} parent=1 // pred_check_branch
      %41 = sbr.rel (0) target = $region13
    $region12: #{tpu_custom_call.1} parent=1 // pred_region
      %43 = vsyncadd [#allocation7], 0
      %s44 = sshll.u32 %s2, 4
      %s45 = int_to_ptr.hbm [resolvable:$true] %s44
      %s46 = sshll.u32 [#allocation8], 4
      %s47 = int_to_ptr.vmem [resolvable:$true] %s46
      %52 = dma.hbm_to_vmem [thread:$0]  %s45, 256, %s47, [#allocation7], 64, 64, 4
    $region13: #{tpu_custom_call.1} parent=1 // pred_fallthru
      _
    // Predicated region
    $region14: #{tpu_custom_call.1} parent=1 // pred_check
      _
    $region15: #{tpu_custom_call.1} parent=1 // pred_check_branch
      %54 = sbr.rel (0) target = $region17
    $region16: #{tpu_custom_call.1} parent=1 // pred_region
      %56 = vsyncadd [#allocation10], 0
      %s57 = sshll.u32 %s3, 4
      %s58 = int_to_ptr.hbm [resolvable:$true] %s57
      %s59 = sshll.u32 [#allocation9], 4
      %s60 = int_to_ptr.vmem [resolvable:$true] %s59
      %65 = dma.hbm_to_vmem [thread:$0]  %s58, 1024, %s60, [#allocation10], 64, 64, 4
    $region17: #{tpu_custom_call.1} parent=1 // pred_fallthru
      _
    // Predicated region
    $region18: #{tpu_custom_call.1} parent=1 // pred_check
      _
    $region19: #{tpu_custom_call.1} parent=1 // pred_check_branch
      %67 = sbr.rel (0) target = $region21
    $region20: #{tpu_custom_call.1} parent=1 // pred_region
      _
    $region21: #{tpu_custom_call.1} parent=1 // pred_fallthru
      _
    // Predicated region
    $region22: #{tpu_custom_call.1} parent=1 // pred_check
      _
    $region23: #{tpu_custom_call.1} parent=1 // pred_check_branch
      %69 = sbr.rel (0) target = $region25
    $region24: #{tpu_custom_call.1} parent=1 // pred_region
      _
    $region25: #{tpu_custom_call.1} parent=1 // pred_fallthru
      _
    // Predicated region
    $region26: #{tpu_custom_call.1} parent=1 // pred_check
      _
    $region27: #{tpu_custom_call.1} parent=1 // pred_check_branch
      %71 = sbr.rel (0) target = $region29
    $region28: #{tpu_custom_call.1} parent=1 // pred_region
      _
    $region29: #{tpu_custom_call.1} parent=1 // pred_fallthru
      _
    // Predicated region
    $region30: #{tpu_custom_call.1} parent=1 // pred_check
      _
    $region31: #{tpu_custom_call.1} parent=1 // pred_check_branch
      %73 = sbr.rel (0) target = $region33
    $region32: #{tpu_custom_call.1} parent=1 // pred_region
      %75 = dma.done [#allocation4], 64
    $region33: #{tpu_custom_call.1} parent=1 // pred_fallthru
      _
    // Predicated region
    $region34: #{tpu_custom_call.1} parent=1 // pred_check
      _
    $region35: #{tpu_custom_call.1} parent=1 // pred_check_branch
      %77 = sbr.rel (0) target = $region37
    $region36: #{tpu_custom_call.1} parent=1 // pred_region
      %79 = dma.done [#allocation7], 128
    $region37: #{tpu_custom_call.1} parent=1 // pred_fallthru
      _
    // Predicated region
    $region38: #{tpu_custom_call.1} parent=1 // pred_check
      _
    $region39: #{tpu_custom_call.1} parent=1 // pred_check_branch
      %81 = sbr.rel (0) target = $region41
    $region40: #{tpu_custom_call.1} parent=1 // pred_region
      %83 = dma.done [#allocation7], 256
    $region41: #{tpu_custom_call.1} parent=1 // pred_fallthru
      _
    // Predicated region
    $region42: #{tpu_custom_call.1} parent=1 // pred_check
      _
    $region43: #{tpu_custom_call.1} parent=1 // pred_check_branch
      %85 = sbr.rel (0) target = $region45
    $region44: #{tpu_custom_call.1} parent=1 // pred_region
      %87 = dma.done [#allocation10], 1024
    $region45: #{tpu_custom_call.1} parent=1 // pred_fallthru
      _
    %v89 = vld [vmem:[#allocation6] sm:$0xff]
    %v90 = vld [vmem:[#allocation3] sm:$0xf]
    %v91 = vld [vmem:[#allocation8] sm:$0xf]
    %v92 = vld [vmem:[#allocation8 + $0x4] sm:$0xf]
    %v93 = vld [vmem:[#allocation8 + $0x8] sm:$0xf]
    %v94 = vld [vmem:[#allocation8 + $0xc] sm:$0xf]
    %v95 = vpack.c.bf16 %v89, %v89
    %v96 = vld [vmem:[#allocation9] sm:$0xf]
    %v97 = vld [vmem:[#allocation9 + $0x4] sm:$0xf]
    %v98 = vld [vmem:[#allocation9 + $0x8] sm:$0xf]
    %v99 = vld [vmem:[#allocation9 + $0xc] sm:$0xf]
    %v100 = vld [vmem:[#allocation9 + $0x10] sm:$0xf]
    %v101 = vld [vmem:[#allocation9 + $0x14] sm:$0xf]
    %v102 = vld [vmem:[#allocation9 + $0x18] sm:$0xf]
    %v103 = vld [vmem:[#allocation9 + $0x1c] sm:$0xf]
    %v104 = vld [vmem:[#allocation9 + $0x20] sm:$0xf]
    %v105 = vld [vmem:[#allocation9 + $0x24] sm:$0xf]
    %v106 = vld [vmem:[#allocation9 + $0x28] sm:$0xf]
    %v107 = vld [vmem:[#allocation9 + $0x2c] sm:$0xf]
    %v108 = vld [vmem:[#allocation9 + $0x30] sm:$0xf]
    %v109 = vld [vmem:[#allocation9 + $0x34] sm:$0xf]
    %v110 = vld [vmem:[#allocation9 + $0x38] sm:$0xf]
    %v111 = vld [vmem:[#allocation9 + $0x3c] sm:$0xf]
    %v128 = vunpack.c.l.b16 %v96
    %v129 = vunpack.c.l.b16 %v97
    %v130 = vunpack.c.l.b16 %v98
    %v131 = vunpack.c.l.b16 %v99
    %v132 = vunpack.c.l.b16 %v100
    %v133 = vunpack.c.l.b16 %v101
    %v134 = vunpack.c.l.b16 %v102
    %v135 = vunpack.c.l.b16 %v103
    %v136 = vunpack.c.l.b16 %v104
    %v137 = vunpack.c.l.b16 %v105
    %v138 = vunpack.c.l.b16 %v106
    %v139 = vunpack.c.l.b16 %v107
    %v140 = vunpack.c.l.b16 %v108
    %v141 = vunpack.c.l.b16 %v109
    %v142 = vunpack.c.l.b16 %v110
    %v143 = vunpack.c.l.b16 %v111
    %v144 = vpack.c.b16 %v129, %v128
    %v145 = vpack.c.b16 %v131, %v130
    %v146 = vpack.c.b16 %v133, %v132
    %v147 = vpack.c.b16 %v135, %v134
    %v148 = vpack.c.b16 %v137, %v136
    %v149 = vpack.c.b16 %v139, %v138
    %v150 = vpack.c.b16 %v141, %v140
    %v151 = vpack.c.b16 %v143, %v142
    %160 = vmatpush.bf16.msra.mxu0 %v151
    %161 = vmatpush.bf16.msra.mxu0 %v150
    %162 = vmatpush.bf16.msra.mxu0 %v149
    %163 = vmatpush.bf16.msra.mxu0 %v148
    %164 = vmatpush.bf16.msra.mxu0 %v147
    %165 = vmatpush.bf16.msra.mxu0 %v146
    %166 = vmatpush.bf16.msra.mxu0 %v145
    %167 = vmatpush.bf16.msra.mxu0 %v144
    %168 = vmatmul.bf16.gmra.mxu0 %v95
    %v169 = vpop.f32.mrf.mxu0
    %v170 = vadd.f32 0.0, %v169
    %v171 = vpop.f32.mrf.mxu0
    %172 = vdwg.mxu0
    %v177 = vunpack.c.l.b16 %v91
    %v178 = vunpack.c.l.b16 %v92
    %v179 = vunpack.c.l.b16 %v93
    %v180 = vunpack.c.l.b16 %v94
    %v181 = vpack.c.b16 %v178, %v177
    %v182 = vpack.c.b16 %v180, %v179
    %vm185 = vcmask 261120
    %v187 = vsel %vm185, %v90, 0
    %189 = vmatpush.bf16.msra.mxu0 0
    %190 = vmatpush.bf16.msra.mxu0 0
    %191 = vmatpush.bf16.msra.mxu0 0
    %192 = vmatpush.bf16.msra.mxu0 0
    %193 = vmatpush.bf16.msra.mxu0 0
    %194 = vmatpush.bf16.msra.mxu0 0
    %195 = vmatpush.bf16.msra.mxu0 %v182
    %196 = vmatpush.bf16.msra.mxu0 %v181
    %197 = vmatmul.bf16.gmra.mxu0 %v187
    %v198 = vpop.f32.mrf.mxu0
    %v199 = vadd.f32 %v170, %v198
    %v200 = vpop.f32.mrf.mxu0
    %201 = vdwg.mxu0
    %v202 = vld [vmem:[%s4] sm:$0x1]
    %v204 = vperm.slane %v202, 0
    %v206 = vadd.f32 %v199, %v204
    %v207 = vmax.f32 %v206, 0.0
    %v208 = vld [vmem:[%s5] sm:$0x1]
    %v210 = vperm.slane %v208, 0
    %v212 = vmul.f32 %v207, %v210
    %213 = vadd.xlane.f32.xlu0 %v212
    %v214 = vpop.xlane.xlu0 %213
    %v215 = vld [vmem:[#allocation2] sm:$0x1]
    %v217 = vperm.slane %v215, 0
    %v219 = vadd.f32 %v214, %v217
    %v220 = vxor.u32 %v219, 2147483648
    %v221 = vmul.f32 %v220, 1.442695
    %v222 = vpow.pop %v221
    %v223 = vadd.f32 %v222, 1.0
    %v224 = vrcp.pop %v223
    %v225 = vmul.f32 %v223, %v224
    %v226 = vsub.f32 1.0, %v225
    %v227 = vmul.f32 %v224, %v226
    %v228 = vadd.f32 %v224, %v227
    %vm229 = vweird.f32 %v223
    %vm230 = vweird.f32 %v224
    %vm231 = vmor %vm229, %vm230
    %v232 = vsel %vm231, %v224, %v228
    %v233 = vand.u32 2147483647, %v223
    %vm234 = vcmp.eq.f32.partialorder %v233, 8.507059e+37
    %v235 = vand.u32 %v223, 2147483648
    %v236 = vor.u32 1.1754944e-38, %v235
    %v237 = vsel %vm234, %v236, %v232
    %v238 = vmul.f32 1.0, %v237
    %240 = vset.pattern.permute.xlu0 0
    %241 = vperm.xlu0 %240, %v238
    %v242 = vpop.permute.xlu0 %241
    %v244 = vmul.f32 %v89, %v242
    %245 = vst [vmem:[#allocation11] sm:$0xff] %v244
    // Predicated region
    $region46: #{tpu_custom_call.1} parent=1 // pred_check
      _
    $region47: #{tpu_custom_call.1} parent=1 // pred_check_branch
      %247 = sbr.rel (0) target = $region49
    $region48: #{tpu_custom_call.1} parent=1 // pred_region
      %249 = vsyncadd [#allocation5], 0
      %s251 = sshll.u32 [#allocation11], 4
      %s252 = int_to_ptr.vmem [resolvable:$true] %s251
      %s253 = sshll.u32 %s7, 4
      %s254 = int_to_ptr.hbm [resolvable:$true] %s253
      %256 = dma.vmem_to_hbm [thread:$0]  %s252, 128, %s254, [#allocation5]
    $region49: #{tpu_custom_call.1} parent=1 // pred_fallthru
      _
    // Predicated region
    $region50: #{tpu_custom_call.1} parent=1 // pred_check
      _
    $region51: #{tpu_custom_call.1} parent=1 // pred_check_branch
      %258 = sbr.rel (0) target = $region53
    $region52: #{tpu_custom_call.1} parent=1 // pred_region
      %260 = dma.done [#allocation5], 128
    $region53: #{tpu_custom_call.1} parent=1 // pred_fallthru
      _
    %261 = vsyncpa [#allocation4], 1
    %262 = vsyncpa [#allocation7], 1
    %263 = vsyncpa [#allocation10], 1
    %264 = vsyncpa [#allocation5], 1

// kernel: tpu_custom_call.1
$region0: #{tpu_custom_call.1}
  #allocation0 [shape = 'u32[]', space=smem, size = 0x4, offset = 0x4, fixed_abs, tag = 'smem constant byte address 0x4 - core index']
  #allocation1 [shape = 'u32[72,128]{1,0:T(1,128)}', space=vmem, size = 0x9000, scoped, tag = 'internal scratch']
  #allocation2 [shape = 'f32[1,1]{1,0:T(1,128)S(1)}', space=vmem, size = 0x200, scoped, tag = 'scoped memory for tpu_custom_call.1']
  %s0 = inlined_call_operand.hbm [shape: bf16[8,32], index: 0, kind: input, shape index: {}]
  %s1 = inlined_call_operand.hbm [shape: f32[8,128], index: 1, kind: input, shape index: {}]
  %s2 = inlined_call_operand.hbm [shape: bf16[32,128], index: 2, kind: input, shape index: {}]
  %s3 = inlined_call_operand.hbm [shape: bf16[128,128], index: 3, kind: input, shape index: {}]
  %s4 = inlined_call_operand.vmem [shape: f32[1,128], index: 4, kind: input, shape index: {}]
  %s5 = inlined_call_operand.vmem [shape: f32[1,128], index: 5, kind: input, shape index: {}]
  %s6 = inlined_call_operand.<no memory space> [shape: f32[1,1], index: 6, kind: input, shape index: {}]
  %s7 = inlined_call_operand.hbm [shape: f32[8,128], index: 7, kind: output, shape index: {}]
  %s8 = sld [smem:[#allocation0]]
  $region54: #{tpu_custom_call.1} parent=0
    _
  %s10 = ssub.s32 1, %s8
  %s11 = scalar_select 0, %s10, %s8
  %v12 = vstv %s6
  %13 = vst [vmem:[#allocation2] sm:$0x1] %v12
  $region1: #{tpu_custom_call.1} parent=0
    #allocation3 [shape = 'u8[2048]{0}', space=vmem, size = 0x800, scoped, tag = 'input window, operand 0, single buffered']
    #allocation4 [shape = 's32[1]{0}', space=sflag, size = 0x4, scoped, tag = 'scoped memory for tpu_custom_call.1']
    #allocation5 [shape = 's32[1]{0}', space=sflag, size = 0x4, scoped, tag = 'scoped memory for tpu_custom_call.1']
    #allocation6 [shape = 'u8[4096]{0}', space=vmem, size = 0x1000, scoped, tag = 'input window, operand 1, single buffered']
    #allocation7 [shape = 's32[1]{0}', space=sflag, size = 0x4, scoped, tag = 'scoped memory for tpu_custom_call.1']
    #allocation8 [shape = 'u8[8192]{0}', space=vmem, size = 0x2000, scoped, tag = 'input window, operand 2, single buffered']
    #allocation9 [shape = 'u8[32768]{0}', space=vmem, size = 0x8000, scoped, tag = 'input window, operand 3, single buffered']
    #allocation10 [shape = 's32[1]{0}', space=sflag, size = 0x4, scoped, tag = 'scoped memory for tpu_custom_call.1']
    #allocation11 [shape = 'u8[4096]{0}', space=vmem, size = 0x1000, scoped, tag = 'output window, operand 0, single buffered']
    %14 = vsyncpa [#allocation4], 0
    %15 = vsyncpa [#allocation7], 0
    %16 = vsyncpa [#allocation10], 0
    %17 = vsyncpa [#allocation5], 0
    // Predicated region
    $region2: #{tpu_custom_call.1} parent=1 // pred_check
      _
    $region3: #{tpu_custom_call.1} parent=1 // pred_check_branch
      %19 = sbr.rel (0) target = $region5
    $region4: #{tpu_custom_call.1} parent=1 // pred_region
      %21 = vsyncadd [#allocation4], 0
      %s23 = sshll.u32 %s0, 4
      %s24 = int_to_ptr.hbm [resolvable:$true] %s23
      %s25 = sshll.u32 [#allocation3], 4
      %s26 = int_to_ptr.vmem [resolvable:$true] %s25
      %28 = dma.hbm_to_vmem [thread:$0]  %s24, 64, %s26, [#allocation4]
    $region5: #{tpu_custom_call.1} parent=1 // pred_fallthru
      _
    // Predicated region
    $region6: #{tpu_custom_call.1} parent=1 // pred_check
      _
    $region7: #{tpu_custom_call.1} parent=1 // pred_check_branch
      %30 = sbr.rel (0) target = $region9
    $region8: #{tpu_custom_call.1} parent=1 // pred_region
      %32 = vsyncadd [#allocation7], 0
      %s34 = sshll.u32 %s1, 4
      %s35 = int_to_ptr.hbm [resolvable:$true] %s34
      %s36 = sshll.u32 [#allocation6], 4
      %s37 = int_to_ptr.vmem [resolvable:$true] %s36
      %39 = dma.hbm_to_vmem [thread:$0]  %s35, 128, %s37, [#allocation7]
    $region9: #{tpu_custom_call.1} parent=1 // pred_fallthru
      _
    // Predicated region
    $region10: #{tpu_custom_call.1} parent=1 // pred_check
      _
    $region11: #{tpu_custom_call.1} parent=1 // pred_check_branch
      %41 = sbr.rel (0) target = $region13
    $region12: #{tpu_custom_call.1} parent=1 // pred_region
      %43 = vsyncadd [#allocation7], 0
      %s44 = sshll.u32 %s2, 4
      %s45 = int_to_ptr.hbm [resolvable:$true] %s44
      %s46 = sshll.u32 [#allocation8], 4
      %s47 = int_to_ptr.vmem [resolvable:$true] %s46
      %52 = dma.hbm_to_vmem [thread:$0]  %s45, 256, %s47, [#allocation7], 64, 64, 4
    $region13: #{tpu_custom_call.1} parent=1 // pred_fallthru
      _
    // Predicated region
    $region14: #{tpu_custom_call.1} parent=1 // pred_check
      _
    $region15: #{tpu_custom_call.1} parent=1 // pred_check_branch
      %54 = sbr.rel (0) target = $region17
    $region16: #{tpu_custom_call.1} parent=1 // pred_region
      %56 = vsyncadd [#allocation10], 0
      %s57 = sshll.u32 %s3, 4
      %s58 = int_to_ptr.hbm [resolvable:$true] %s57
      %s59 = sshll.u32 [#allocation9], 4
      %s60 = int_to_ptr.vmem [resolvable:$true] %s59
      %65 = dma.hbm_to_vmem [thread:$0]  %s58, 1024, %s60, [#allocation10], 64, 64, 4
    $region17: #{tpu_custom_call.1} parent=1 // pred_fallthru
      _
    // Predicated region
    $region18: #{tpu_custom_call.1} parent=1 // pred_check
      _
    $region19: #{tpu_custom_call.1} parent=1 // pred_check_branch
      %67 = sbr.rel (0) target = $region21
    $region20: #{tpu_custom_call.1} parent=1 // pred_region
      _
    $region21: #{tpu_custom_call.1} parent=1 // pred_fallthru
      _
    // Predicated region
    $region22: #{tpu_custom_call.1} parent=1 // pred_check
      _
    $region23: #{tpu_custom_call.1} parent=1 // pred_check_branch
      %69 = sbr.rel (0) target = $region25
    $region24: #{tpu_custom_call.1} parent=1 // pred_region
      _
    $region25: #{tpu_custom_call.1} parent=1 // pred_fallthru
      _
    // Predicated region
    $region26: #{tpu_custom_call.1} parent=1 // pred_check
      _
    $region27: #{tpu_custom_call.1} parent=1 // pred_check_branch
      %71 = sbr.rel (0) target = $region29
    $region28: #{tpu_custom_call.1} parent=1 // pred_region
      _
    $region29: #{tpu_custom_call.1} parent=1 // pred_fallthru
      _
    // Predicated region
    $region30: #{tpu_custom_call.1} parent=1 // pred_check
      _
    $region31: #{tpu_custom_call.1} parent=1 // pred_check_branch
      %73 = sbr.rel (0) target = $region33
    $region32: #{tpu_custom_call.1} parent=1 // pred_region
      %75 = dma.done [#allocation4], 64
    $region33: #{tpu_custom_call.1} parent=1 // pred_fallthru
      _
    // Predicated region
    $region34: #{tpu_custom_call.1} parent=1 // pred_check
      _
    $region35: #{tpu_custom_call.1} parent=1 // pred_check_branch
      %77 = sbr.rel (0) target = $region37
    $region36: #{tpu_custom_call.1} parent=1 // pred_region
      %79 = dma.done [#allocation7], 128
    $region37: #{tpu_custom_call.1} parent=1 // pred_fallthru
      _
    // Predicated region
    $region38: #{tpu_custom_call.1} parent=1 // pred_check
      _
    $region39: #{tpu_custom_call.1} parent=1 // pred_check_branch
      %81 = sbr.rel (0) target = $region41
    $region40: #{tpu_custom_call.1} parent=1 // pred_region
      %83 = dma.done [#allocation7], 256
    $region41: #{tpu_custom_call.1} parent=1 // pred_fallthru
      _
    // Predicated region
    $region42: #{tpu_custom_call.1} parent=1 // pred_check
      _
    $region43: #{tpu_custom_call.1} parent=1 // pred_check_branch
      %85 = sbr.rel (0) target = $region45
    $region44: #{tpu_custom_call.1} parent=1 // pred_region
      %87 = dma.done [#allocation10], 1024
    $region45: #{tpu_custom_call.1} parent=1 // pred_fallthru
      _
    %v89 = vld [vmem:[#allocation6] sm:$0xff]
    %v90 = vld [vmem:[#allocation3] sm:$0xf]
    %v91 = vld [vmem:[#allocation8] sm:$0xf]
    %v92 = vld [vmem:[#allocation8 + $0x4] sm:$0xf]
    %v93 = vld [vmem:[#allocation8 + $0x8] sm:$0xf]
    %v94 = vld [vmem:[#allocation8 + $0xc] sm:$0xf]
    %v95 = vpack.c.bf16 %v89, %v89
    %v96 = vld [vmem:[#allocation9] sm:$0xf]
    %v97 = vld [vmem:[#allocation9 + $0x4] sm:$0xf]
    %v98 = vld [vmem:[#allocation9 + $0x8] sm:$0xf]
    %v99 = vld [vmem:[#allocation9 + $0xc] sm:$0xf]
    %v100 = vld [vmem:[#allocation9 + $0x10] sm:$0xf]
    %v101 = vld [vmem:[#allocation9 + $0x14] sm:$0xf]
    %v102 = vld [vmem:[#allocation9 + $0x18] sm:$0xf]
    %v103 = vld [vmem:[#allocation9 + $0x1c] sm:$0xf]
    %v104 = vld [vmem:[#allocation9 + $0x20] sm:$0xf]
    %v105 = vld [vmem:[#allocation9 + $0x24] sm:$0xf]
    %v106 = vld [vmem:[#allocation9 + $0x28] sm:$0xf]
    %v107 = vld [vmem:[#allocation9 + $0x2c] sm:$0xf]
    %v108 = vld [vmem:[#allocation9 + $0x30] sm:$0xf]
    %v109 = vld [vmem:[#allocation9 + $0x34] sm:$0xf]
    %v110 = vld [vmem:[#allocation9 + $0x38] sm:$0xf]
    %v111 = vld [vmem:[#allocation9 + $0x3c] sm:$0xf]
    %v128 = vunpack.c.l.b16 %v96
    %v129 = vunpack.c.l.b16 %v97
    %v130 = vunpack.c.l.b16 %v98
    %v131 = vunpack.c.l.b16 %v99
    %v132 = vunpack.c.l.b16 %v100
    %v133 = vunpack.c.l.b16 %v101
    %v134 = vunpack.c.l.b16 %v102
    %v135 = vunpack.c.l.b16 %v103
    %v136 = vunpack.c.l.b16 %v104
    %v137 = vunpack.c.l.b16 %v105
    %v138 = vunpack.c.l.b16 %v106
    %v139 = vunpack.c.l.b16 %v107
    %v140 = vunpack.c.l.b16 %v108
    %v141 = vunpack.c.l.b16 %v109
    %v142 = vunpack.c.l.b16 %v110
    %v143 = vunpack.c.l.b16 %v111
    %v144 = vpack.c.b16 %v129, %v128
    %v145 = vpack.c.b16 %v131, %v130
    %v146 = vpack.c.b16 %v133, %v132
    %v147 = vpack.c.b16 %v135, %v134
    %v148 = vpack.c.b16 %v137, %v136
    %v149 = vpack.c.b16 %v139, %v138
    %v150 = vpack.c.b16 %v141, %v140
    %v151 = vpack.c.b16 %v143, %v142
    %160 = vmatpush.bf16.msra.mxu0 %v151
    %161 = vmatpush.bf16.msra.mxu0 %v150
    %162 = vmatpush.bf16.msra.mxu0 %v149
    %163 = vmatpush.bf16.msra.mxu0 %v148
    %164 = vmatpush.bf16.msra.mxu0 %v147
    %165 = vmatpush.bf16.msra.mxu0 %v146
    %166 = vmatpush.bf16.msra.mxu0 %v145
    %167 = vmatpush.bf16.msra.mxu0 %v144
    %168 = vmatmul.bf16.gmra.mxu0 %v95
    %v169 = vpop.f32.mrf.mxu0
    %v170 = vadd.f32 0.0, %v169
    %v171 = vpop.f32.mrf.mxu0
    %172 = vdwg.mxu0
    %v177 = vunpack.c.l.b16 %v91
    %v178 = vunpack.c.l.b16 %v92
    %v179 = vunpack.c.l.b16 %v93
    %v180 = vunpack.c.l.b16 %v94
    %v181 = vpack.c.b16 %v178, %v177
    %v182 = vpack.c.b16 %v180, %v179
    %vm185 = vcmask 261120
    %v187 = vsel %vm185, %v90, 0
    %189 = vmatpush.bf16.msra.mxu0 0
    %190 = vmatpush.bf16.msra.mxu0 0
    %191 = vmatpush.bf16.msra.mxu0 0
    %192 = vmatpush.bf16.msra.mxu0 0
    %193 = vmatpush.bf16.msra.mxu0 0
    %194 = vmatpush.bf16.msra.mxu0 0
    %195 = vmatpush.bf16.msra.mxu0 %v182
    %196 = vmatpush.bf16.msra.mxu0 %v181
    %197 = vmatmul.bf16.gmra.mxu0 %v187
    %v198 = vpop.f32.mrf.mxu0
    %v199 = vadd.f32 %v170, %v198
    %v200 = vpop.f32.mrf.mxu0
    %201 = vdwg.mxu0
    %v202 = vld [vmem:[%s4] sm:$0x1]
    %v204 = vperm.slane %v202, 0
    %v206 = vadd.f32 %v199, %v204
    %v207 = vmax.f32 %v206, 0.0
    %v208 = vld [vmem:[%s5] sm:$0x1]
    %v210 = vperm.slane %v208, 0
    %v212 = vmul.f32 %v207, %v210
    %213 = vadd.xlane.f32.xlu0 %v212
    %v214 = vpop.xlane.xlu0 %213
    %v215 = vld [vmem:[#allocation2] sm:$0x1]
    %v217 = vperm.slane %v215, 0
    %v219 = vadd.f32 %v214, %v217
    %v220 = vxor.u32 %v219, 2147483648
    %v221 = vmul.f32 %v220, 1.442695
    %v222 = vpow.pop %v221
    %v223 = vadd.f32 %v222, 1.0
    %v224 = vrcp.pop %v223
    %v225 = vmul.f32 %v223, %v224
    %v226 = vsub.f32 1.0, %v225
    %v227 = vmul.f32 %v224, %v226
    %v228 = vadd.f32 %v224, %v227
    %vm229 = vweird.f32 %v223
    %vm230 = vweird.f32 %v224
    %vm231 = vmor %vm229, %vm230
    %v232 = vsel %vm231, %v224, %v228
    %v233 = vand.u32 2147483647, %v223
    %vm234 = vcmp.eq.f32.partialorder %v233, 8.507059e+37
    %v235 = vand.u32 %v223, 2147483648
    %v236 = vor.u32 1.1754944e-38, %v235
    %v237 = vsel %vm234, %v236, %v232
    %v238 = vmul.f32 1.0, %v237
    %240 = vset.pattern.permute.xlu0 0
    %241 = vperm.xlu0 %240, %v238
    %v242 = vpop.permute.xlu0 %241
    %v244 = vmul.f32 %v89, %v242
    %245 = vst [vmem:[#allocation11] sm:$0xff] %v244
    // Predicated region
    $region46: #{tpu_custom_call.1} parent=1 // pred_check
      _
    $region47: #{tpu_custom_call.1} parent=1 // pred_check_branch
      %247 = sbr.rel (0) target = $region49
    $region48: #{tpu_custom_call.1} parent=1 // pred_region
      %249 = vsyncadd [#allocation5], 0
      %s251 = sshll.u32 [#allocation11], 4
      %s252 = int_to_ptr.vmem [resolvable:$true] %s251
      %s253 = sshll.u32 %s7, 4
      %s254 = int_to_ptr.hbm [resolvable:$true] %s253
      %256 = dma.vmem_to_hbm [thread:$0]  %s252, 128, %s254, [#allocation5]
    $region49: #{tpu_custom_call.1} parent=1 // pred_fallthru
      _
    // Predicated region
    $region50: #{tpu_custom_call.1} parent=1 // pred_check
      _
    $region51: #{tpu_custom_call.1} parent=1 // pred_check_branch
      %258 = sbr.rel (0) target = $region53
    $region52: #{tpu_custom_call.1} parent=1 // pred_region
      %260 = dma.done [#allocation5], 128
    $region53: #{tpu_custom_call.1} parent=1 // pred_fallthru
      _
    %261 = vsyncpa [#allocation4], 1
    %262 = vsyncpa [#allocation7], 1
    %263 = vsyncpa [#allocation10], 1
    %264 = vsyncpa [#allocation5], 1

</llo_original>
